<compile_context>
chip_gen: v7x
topology: tpu7x:2x2x1
jax: 0.10.0
libtpu: 0.0.40
codegen_flags: <defaults>
</compile_context>

<pallas_src>
import functools

import jax
import jax.numpy as jnp
from jax.experimental import pallas as pl
from jax.experimental.pallas import tpu as pltpu


# --------------------------------------------------------------------------- #
# Kernel body (one body, statically specialized via functools.partial).
# --------------------------------------------------------------------------- #
def _linear_kernel(*refs, has_bias: bool, acc_in_out: bool):
    if has_bias:
        if acc_in_out:
            x_ref, w_ref, b_ref, o_ref = refs
            acc_ref = o_ref                       # f32 output: accumulate in place
        else:
            x_ref, w_ref, b_ref, o_ref, acc_ref = refs
    else:
        b_ref = None
        if acc_in_out:
            x_ref, w_ref, o_ref = refs
            acc_ref = o_ref
        else:
            x_ref, w_ref, o_ref, acc_ref = refs

    k = pl.program_id(2)
    nk = pl.num_programs(2)

    prod = jnp.dot(x_ref[...], w_ref[...], preferred_element_type=jnp.float32)

    @pl.when(k == 0)
    def _():
        # First K step writes directly (no zero-fill + add pass).
        acc_ref[...] = prod.astype(acc_ref.dtype)

    @pl.when(k > 0)
    def _():
        acc_ref[...] += prod.astype(acc_ref.dtype)

    # Finalize only when there is actual work to do (bias add and/or cast).
    if has_bias or not acc_in_out:
        @pl.when(k == nk - 1)
        def _():
            result = acc_ref[...].astype(jnp.float32)
            if has_bias:
                result = result + b_ref[...].astype(jnp.float32)
            o_ref[...] = result.astype(o_ref.dtype)


# --------------------------------------------------------------------------- #
# Host-side helpers (all trace-time Python on static shapes).
# --------------------------------------------------------------------------- #
def _round_up(x, m):
    return (x + m - 1) // m * m


def _divisor_tile(dim, unit, cap):
    """Largest multiple of `unit` that divides `dim` (a multiple of `unit`) and <= cap."""
    q = dim // unit
    best = 1
    for mult in range(1, min(q, max(cap // unit, 1)) + 1):
        if q % mult == 0:
            best = mult
    return unit * best


def _vmem_budget_bytes():
    """Per-generation scoped-VMEM budget: ~3/4 of physical, capped at 96 MiB."""
    phys = 64 * 1024 * 1024  # conservative default (v7x per-TC physical)
    try:
        info = pltpu.get_tpu_info()
        for attr in ("vmem_capacity_bytes", "vmem_bytes", "vmem_size_bytes"):
            v = getattr(info, attr, None)
            if v:
                phys = int(v)
                break
    except Exception:
        pass
    return min((phys * 3) // 4, 96 * 1024 * 1024)


def _pick_tiles(m_eff, k_pad, n_pad, in_itemsize, out_itemsize, sub,
                acc_in_out, budget):
    tm_cap, tn_cap, tk_cap = 512, 512, 1024

    def tiles(tm_cap, tn_cap, tk_cap):
        tm = min(_round_up(m_eff, sub), tm_cap)
        tn = min(n_pad, tn_cap)
        tk = _divisor_tile(k_pad, 128, tk_cap)
        return tm, tn, tk

    def footprint(tm, tn, tk):
        fb = 2 * (tm * tk + tk * tn) * in_itemsize   # double-buffered input streams
        fb += 2 * tm * tn * out_itemsize             # output block (double-buffered)
        fb += 2 * tn * in_itemsize                   # bias (negligible)
        if not acc_in_out:
            fb += tm * tn * 4                        # f32 accumulator scratch
        return fb

    tm, tn, tk = tiles(tm_cap, tn_cap, tk_cap)
    while footprint(tm, tn, tk) > budget:
        if tk_cap > 256:
            tk_cap //= 2
        elif tn_cap > 128:
            tn_cap //= 2
        elif tm_cap > 8 * sub:
            tm_cap //= 2
        else:
            break
        tm, tn, tk = tiles(tm_cap, tn_cap, tk_cap)

    # Keep at least 2 parallel (M x N) blocks so both v7x TensorCores get work.
    if pl.cdiv(m_eff, tm) * pl.cdiv(n_pad, tn) < 2:
        if n_pad > 128:
            tn = _round_up(pl.cdiv(n_pad, 2), 128)
        elif m_eff > sub:
            tm = _round_up(pl.cdiv(m_eff, 2), sub)

    return tm, tn, tk


def prepare_poincare_weight(weight):
    """One-time layout transform: (out, in) -> zero-padded [K_pad, N_pad].

    Call this once at parameter-init / load time so the per-call path never
    re-transposes or re-pads the weight through HBM.
    """
    out_f, in_f = weight.shape
    k_pad = _round_up(in_f, 128)
    n_pad = _round_up(out_f, 128)
    return jnp.pad(jnp.transpose(weight),
                   ((0, k_pad - in_f), (0, n_pad - out_f)))


# --------------------------------------------------------------------------- #
# Forward pass (semantics of MinimalPoincareBallLinear.forward == F.linear).
# --------------------------------------------------------------------------- #
@functools.partial(jax.jit, static_argnames=("out_features", "force_pallas"))
def poincare_ball_linear(x, w_kn, bias=None, *, out_features, force_pallas=False):
    """y = x @ W^T + b using a pre-prepared [K_pad, N_pad] weight (see
    prepare_poincare_weight)."""
    *lead, in_features = x.shape
    k_pad, n_pad = w_kn.shape

    x2d = x.reshape(-1, in_features)
    m = x2d.shape[0]

    # Genuinely tiny problems: a plain fused XLA GEMM beats any kernel launch.
    if not force_pallas and (m * in_features * out_features) < (1 << 18):
        y = x2d @ w_kn[:in_features, :out_features]
        if bias is not None:
            y = y + bias
        return y.reshape(*lead, out_features)

    in_itemsize = jnp.dtype(x.dtype).itemsize
    out_dtype = x.dtype
    out_itemsize = jnp.dtype(out_dtype).itemsize
    sub = {4: 8, 2: 16, 1: 32}.get(in_itemsize, 8)   # dtype-aware sublane granularity
    acc_in_out = out_dtype == jnp.float32            # f32: accumulate in output block

    m_eff = _round_up(m, sub)
    budget = _vmem_budget_bytes()
    tm, tn, tk = _pick_tiles(m_eff, k_pad, n_pad, in_itemsize, out_itemsize,
                             sub, acc_in_out, budget)

    # Only K needs zero padding for correctness; M pad is <= sub-1 rows (no-op
    # when the batch is already aligned). N padding was done once at weight
    # prepare time. Edge M/N blocks rely on Pallas partial-block masking.
    x_p = jnp.pad(x2d, ((0, m_eff - m), (0, k_pad - in_features)))

    grid = (pl.cdiv(m_eff, tm), pl.cdiv(n_pad, tn), k_pad // tk)

    in_specs = [
        pl.BlockSpec((tm, tk), lambda i, j, k: (i, k)),
        pl.BlockSpec((tk, tn), lambda i, j, k: (k, j)),
    ]
    operands = [x_p, w_kn]

    has_bias = bias is not None
    if has_bias:
        b_p = jnp.pad(bias, (0, n_pad - out_features)).reshape(1, n_pad)
        in_specs.append(pl.BlockSpec((1, tn), lambda i, j, k: (0, j)))
        operands.append(b_p)

    scratch_shapes = [] if acc_in_out else [pltpu.VMEM((tm, tn), jnp.float32)]

    kernel = functools.partial(_linear_kernel, has_bias=has_bias,
                               acc_in_out=acc_in_out)

    flops = 2 * m * in_features * out_features
    bytes_accessed = ((m_eff * k_pad + k_pad * n_pad) * in_itemsize
                      + m_eff * n_pad * out_itemsize)
    if has_bias:
        bytes_accessed += n_pad * jnp.dtype(bias.dtype).itemsize

    out_padded = pl.pallas_call(
        kernel,
        out_shape=jax.ShapeDtypeStruct((m_eff, n_pad), out_dtype),
        grid_spec=pltpu.PrefetchScalarGridSpec(
            num_scalar_prefetch=0,
            grid=grid,
            in_specs=in_specs,
            out_specs=pl.BlockSpec((tm, tn), lambda i, j, k: (i, j)),
            scratch_shapes=scratch_shapes,
        ),
        compiler_params=pltpu.CompilerParams(
            dimension_semantics=("parallel", "parallel", "arbitrary"),
            vmem_limit_bytes=int(budget),
        ),
        cost_estimate=pl.CostEstimate(
            flops=flops, transcendentals=0, bytes_accessed=bytes_accessed),
    )(*operands)

    return out_padded[:m, :out_features].reshape(*lead, out_features)


# --------------------------------------------------------------------------- #
# Self-test.
# --------------------------------------------------------------------------- #
if __name__ == "__main__":
    key = jax.random.PRNGKey(0)
    k_x, k_w = jax.random.split(key)

    batch, seq, in_features, out_features = 2, 8, 32, 16

    # Deterministic parameter init mirroring the module's __init__:
    #   weight = randn(out, in) * 0.1 ; bias = zeros(out)
    weight = jax.random.normal(k_w, (out_features, in_features), jnp.float32) * 0.1
    bias = jnp.zeros((out_features,), jnp.float32)

    # One-time weight layout preparation (hoisted out of the per-call path).
    w_kn = prepare_poincare_weight(weight)

    x = jax.random.normal(k_x, (batch, seq, in_features), jnp.float32)

    # force_pallas=True so the Pallas kernel is exercised even at toy sizes
    # (production-sized layers take this path automatically).
    y = poincare_ball_linear(x, w_kn, bias, out_features=out_features,
                             force_pallas=True)
    y = jax.block_until_ready(y)

    # Also exercise the bias-free kernel variant.
    y_nb = poincare_ball_linear(x, w_kn, None, out_features=out_features,
                                force_pallas=True)
    y_nb = jax.block_until_ready(y_nb)

    # Reference check against plain JAX (same math as F.linear).
    y_ref = x @ weight.T + bias
    y_nb_ref = x @ weight.T
    assert y.shape == (batch, seq, out_features)
    assert jnp.allclose(y, y_ref, atol=1e-5, rtol=1e-5)
    assert jnp.allclose(y_nb, y_nb_ref, atol=1e-5, rtol=1e-5)

    print("KERNEL_OK")
</pallas_src>

<mosaic_0001>
module attributes {stable_mosaic.version = 11 : i64} {
  func.func @_linear_kernel(%arg0: i32, %arg1: i32, %arg2: i32, %arg3: memref<8x128xf32, #tpu.memory_space<vmem>>, %arg4: memref<128x128xf32, #tpu.memory_space<vmem>>, %arg5: memref<1x128xf32, #tpu.memory_space<vmem>>, %arg6: memref<8x128xf32, #tpu.memory_space<vmem>>) attributes {dimension_semantics = [#tpu.dimension_semantics<parallel>, #tpu.dimension_semantics<parallel>, #tpu.dimension_semantics<arbitrary>], iteration_bounds = array<i64: 2, 1, 1>, scalar_prefetch = 0 : i64, scratch_operands = 0 : i64, tpu.core_type = #tpu.core_type<tc>, window_params = [{transform_indices = @transform_0, window_bounds = array<i64: 8, 128>}, {transform_indices = @transform_1, window_bounds = array<i64: 128, 128>}, {transform_indices = @transform_2, window_bounds = array<i64: 1, 128>}, {transform_indices = @transform_3, window_bounds = array<i64: 8, 128>}]} {
    %c0 = arith.constant 0 : index
    %c0_0 = arith.constant 0 : index
    %0 = vector.load %arg3[%c0, %c0_0] : memref<8x128xf32, #tpu.memory_space<vmem>>, vector<8x128xf32>
    %c0_1 = arith.constant 0 : index
    %c0_2 = arith.constant 0 : index
    %1 = vector.load %arg4[%c0_1, %c0_2] : memref<128x128xf32, #tpu.memory_space<vmem>>, vector<128x128xf32>
    %cst = arith.constant dense<0.000000e+00> : vector<8x128xf32>
    %2 = tpu.matmul %0, %1, %cst {dimension_numbers = #tpu.dot_dimension_numbers<[1], [0], [0], [1], [0, 0, 1, 1], [], []>} : vector<8x128xf32>, vector<128x128xf32>, vector<8x128xf32> -> vector<8x128xf32>
    %c0_i32 = arith.constant 0 : i32
    %3 = arith.cmpi eq, %arg2, %c0_i32 : i32
    %4 = arith.extui %3 : i1 to i32
    %c0_i32_3 = arith.constant 0 : i32
    %5 = arith.cmpi ne, %4, %c0_i32_3 : i32
    scf.if %5 {
      %c0_8 = arith.constant 0 : index
      %c0_9 = arith.constant 0 : index
      %12 = vector.load %arg6[%c0_8, %c0_9] : memref<8x128xf32, #tpu.memory_space<vmem>>, vector<8x128xf32>
      tpu.vector_store %arg6[%c0_8, %c0_9], %2 {strides = array<i32>} : memref<8x128xf32, #tpu.memory_space<vmem>>, vector<8x128xf32>,
    } else {
    }
    %c0_i32_4 = arith.constant 0 : i32
    %6 = arith.cmpi sgt, %arg2, %c0_i32_4 : i32
    %7 = arith.extui %6 : i1 to i32
    %c0_i32_5 = arith.constant 0 : i32
    %8 = arith.cmpi ne, %7, %c0_i32_5 : i32
    scf.if %8 {
      %c0_8 = arith.constant 0 : index
      %c0_9 = arith.constant 0 : index
      %12 = vector.load %arg6[%c0_8, %c0_9] : memref<8x128xf32, #tpu.memory_space<vmem>>, vector<8x128xf32>
      %13 = arith.addf %12, %2 : vector<8x128xf32>
      %c0_10 = arith.constant 0 : index
      %c0_11 = arith.constant 0 : index
      %14 = vector.load %arg6[%c0_10, %c0_11] : memref<8x128xf32, #tpu.memory_space<vmem>>, vector<8x128xf32>
      tpu.vector_store %arg6[%c0_10, %c0_11], %13 {strides = array<i32>} : memref<8x128xf32, #tpu.memory_space<vmem>>, vector<8x128xf32>,
    } else {
    }
    %c0_i32_6 = arith.constant 0 : i32
    %9 = arith.cmpi eq, %arg2, %c0_i32_6 : i32
    %10 = arith.extui %9 : i1 to i32
    %c0_i32_7 = arith.constant 0 : i32
    %11 = arith.cmpi ne, %10, %c0_i32_7 : i32
    scf.if %11 {
      %c0_8 = arith.constant 0 : index
      %c0_9 = arith.constant 0 : index
      %12 = vector.load %arg6[%c0_8, %c0_9] : memref<8x128xf32, #tpu.memory_space<vmem>>, vector<8x128xf32>
      %c0_10 = arith.constant 0 : index
      %c0_11 = arith.constant 0 : index
      %13 = vector.load %arg5[%c0_10, %c0_11] : memref<1x128xf32, #tpu.memory_space<vmem>>, vector<1x128xf32>
      %14 = vector.broadcast %13 : vector<1x128xf32> to vector<8x128xf32>
      %15 = arith.addf %12, %14 : vector<8x128xf32>
      %c0_12 = arith.constant 0 : index
      %c0_13 = arith.constant 0 : index
      %16 = vector.load %arg6[%c0_12, %c0_13] : memref<8x128xf32, #tpu.memory_space<vmem>>, vector<8x128xf32>
      tpu.vector_store %arg6[%c0_12, %c0_13], %15 {strides = array<i32>} : memref<8x128xf32, #tpu.memory_space<vmem>>, vector<8x128xf32>,
    } else {
    }
    return
  }
  func.func @transform_0(%arg0: i32, %arg1: i32, %arg2: i32) -> (i32, i32) {
    %c0_i32 = arith.constant 0 : i32
    return %arg0, %arg2 : i32, i32
  }
  func.func @transform_1(%arg0: i32, %arg1: i32, %arg2: i32) -> (i32, i32) {
    %c0_i32 = arith.constant 0 : i32
    return %arg2, %arg1 : i32, i32
  }
  func.func @transform_2(%arg0: i32, %arg1: i32, %arg2: i32) -> (i32, i32) {
    %c0_i32 = arith.constant 0 : i32
    %c0_i32_0 = arith.constant 0 : i32
    return %c0_i32, %arg1 : i32, i32
  }
  func.func @transform_3(%arg0: i32, %arg1: i32, %arg2: i32) -> (i32, i32) {
    %c0_i32 = arith.constant 0 : i32
    return %arg0, %arg1 : i32, i32
  }
}

</mosaic_0001>

<llo_original>
// kernel: poincare_ball_linear.1
$region0: #{poincare_ball_linear.1}
  #allocation0 [shape = 'u32[]', space=smem, size = 0x4, offset = 0x4, fixed_abs, tag = 'smem constant byte address 0x4 - core index']
  #allocation1 [shape = 'u32[144,128]{1,0:T(1,128)}', space=vmem, size = 0x12000, scoped, tag = 'internal scratch']
  %s0 = inlined_call_operand.vmem [shape: f32[16,128], index: 0, kind: input, shape index: {}]
  %s1 = inlined_call_operand.hbm [shape: f32[128,128], index: 1, kind: input, shape index: {}]
  %s2 = inlined_call_operand.vmem [shape: f32[1,128], index: 2, kind: input, shape index: {}]
  %s3 = inlined_call_operand.vmem [shape: f32[16,128], index: 3, kind: output, shape index: {}]
  %s4 = sld [smem:[#allocation0]]
  $region61: #{poincare_ball_linear.1} parent=0
    _
  %s6 = ssub.s32 1, %s4
  %s7 = scalar_select 0, %s6, %s4
  $region1: #{poincare_ball_linear.1} parent=0
    #allocation2 [shape = 'u8[65536]{0}', space=vmem, size = 0x10000, scoped, tag = 'input window, operand 1, single buffered']
    #allocation3 [shape = 's32[2]{0}', space=sflag, size = 0x8, scoped, tag = 'scoped memory for poincare_ball_linear.1']
    %8 = vsyncpa [#allocation3], 0
    loop: start=0, step=1, limit=4
    $region2: #{poincare_ball_linear.1} parent=1 // loop_pre_header
      _
    $region3: #{poincare_ball_linear.1} parent=1 // loop_header
      %s10 = sphi 0, %s14
      %p11 = scmp.ge.s32.totalorder %s10, 4
      %s17 = sphi 0, %s36
      %s18 = sphi 0, %s32
      %s19 = sphi 0, %s28
      %s20 = sphi 0, %s17
      %s21 = sphi 0, %s18
      %s22 = sphi 0, %s19
      %s23 = sphi 0, %s20
      %s24 = sphi 0, %s21
      %s25 = sphi 0, %s22
      %s41 = sphi 0, %s43
      %s44 = sphi 0, %s41
      %s45 = sphi 0, %s44
      %s61 = sphi 0, %s45
      %s69 = sphi 0, %s71
      %s72 = sphi 0, %s69
      %s73 = sphi 0, %s72
      %s89 = sphi 0, %s73
      %s95 = sphi 0, %s97
      %s98 = sphi 0, %s95
      %s99 = sphi 0, %s98
      %s115 = sphi 0, %s99
      %s123 = sphi 0, %s125
      %s126 = sphi 0, %s123
      %s127 = sphi 0, %s126
      %s143 = sphi 0, %s127
    $region4: #{poincare_ball_linear.1} parent=1 // loop_header_branch
      %13 = sbr.rel (%p11) target = $region8
    $region5: #{poincare_ball_linear.1} parent=1 // loop_body
      %s15 = ssub.s32 %s10, 1
      %s16 = ssub.s32 %s10, 2
      %s26 = sadd.s32 1, %s19
      %p27 = scmp.ge.s32.totalorder %s26, 1
      %s28 = scalar_select %p27, 0, %s26
      %s29 = sadd.s32 1, %s18
      %s30 = scalar_select %p27, %s29, %s18
      %p31 = scmp.ge.s32.totalorder %s30, 1
      %s32 = scalar_select %p31, 0, %s30
      %s33 = sadd.s32 1, %s17
      %s34 = scalar_select %p31, %s33, %s17
      %p35 = scmp.ge.s32.totalorder %s34, 2
      %s36 = scalar_select %p35, 0, %s34
      %s37 = ssub.s32 %s17, %s36
      %s38 = ssub.s32 %s19, %s28
      %s39 = sor.u32 %s37, %s38
      %p40 = scmp.eq.s32.totalorder %s39, 0
      %s42 = sadd.s32 %s41, 1
      %s43 = scalar_select %p40, %s41, %s42
      %p46 = pneg %p40
      %p47 = scmp.eq.s32.totalorder %s10, 1
      %p48 = por %p46, %p47
      %p49 = scmp.ne.s32.totalorder %s41, %s44
      %p50 = scmp.eq.s32.totalorder %s10, 0
      %p51 = por %p49, %p50
      %p52 = scmp.ne.s32.totalorder %s41, %s44
      %p53 = scmp.eq.s32.totalorder %s15, 1
      %p54 = por %p52, %p53
      %p55 = scmp.ne.s32.totalorder %s44, %s45
      %p56 = scmp.eq.s32.totalorder %s15, 0
      %p57 = por %p55, %p56
      %p58 = scmp.ne.s32.totalorder %s44, %s45
      %p59 = scmp.eq.s32.totalorder %s16, 1
      %p60 = por %p58, %p59
      %p62 = scmp.ne.s32.totalorder %s45, %s61
      %p63 = scmp.eq.s32.totalorder %s16, 0
      %p64 = por %p62, %p63
      %s65 = ssub.s32 %s19, %s28
      %s66 = ssub.s32 %s18, %s32
      %s67 = sor.u32 %s65, %s66
      %p68 = scmp.eq.s32.totalorder %s67, 0
      %s70 = sadd.s32 %s69, 1
      %s71 = scalar_select %p68, %s69, %s70
      %p74 = pneg %p68
      %p75 = scmp.eq.s32.totalorder %s10, 1
      %p76 = por %p74, %p75
      %p77 = scmp.ne.s32.totalorder %s69, %s72
      %p78 = scmp.eq.s32.totalorder %s10, 0
      %p79 = por %p77, %p78
      %p80 = scmp.ne.s32.totalorder %s69, %s72
      %p81 = scmp.eq.s32.totalorder %s15, 1
      %p82 = por %p80, %p81
      %p83 = scmp.ne.s32.totalorder %s72, %s73
      %p84 = scmp.eq.s32.totalorder %s15, 0
      %p85 = por %p83, %p84
      %p86 = scmp.ne.s32.totalorder %s72, %s73
      %p87 = scmp.eq.s32.totalorder %s16, 1
      %p88 = por %p86, %p87
      %p90 = scmp.ne.s32.totalorder %s73, %s89
      %p91 = scmp.eq.s32.totalorder %s16, 0
      %p92 = por %p90, %p91
      %s93 = ssub.s32 %s18, %s32
      %p94 = scmp.eq.s32.totalorder %s93, 0
      %s96 = sadd.s32 %s95, 1
      %s97 = scalar_select %p94, %s95, %s96
      %p100 = pneg %p94
      %p101 = scmp.eq.s32.totalorder %s10, 1
      %p102 = por %p100, %p101
      %p103 = scmp.ne.s32.totalorder %s95, %s98
      %p104 = scmp.eq.s32.totalorder %s10, 0
      %p105 = por %p103, %p104
      %p106 = scmp.ne.s32.totalorder %s95, %s98
      %p107 = scmp.eq.s32.totalorder %s15, 1
      %p108 = por %p106, %p107
      %p109 = scmp.ne.s32.totalorder %s98, %s99
      %p110 = scmp.eq.s32.totalorder %s15, 0
      %p111 = por %p109, %p110
      %p112 = scmp.ne.s32.totalorder %s98, %s99
      %p113 = scmp.eq.s32.totalorder %s16, 1
      %p114 = por %p112, %p113
      %p116 = scmp.ne.s32.totalorder %s99, %s115
      %p117 = scmp.eq.s32.totalorder %s16, 0
      %p118 = por %p116, %p117
      %s119 = ssub.s32 %s17, %s36
      %s120 = ssub.s32 %s18, %s32
      %s121 = sor.u32 %s119, %s120
      %p122 = scmp.eq.s32.totalorder %s121, 0
      %s124 = sadd.s32 %s123, 1
      %s125 = scalar_select %p122, %s123, %s124
      %p128 = pneg %p122
      %p129 = scmp.eq.s32.totalorder %s10, 1
      %p130 = por %p128, %p129
      %p131 = scmp.ne.s32.totalorder %s123, %s126
      %p132 = scmp.eq.s32.totalorder %s10, 0
      %p133 = por %p131, %p132
      %p134 = scmp.ne.s32.totalorder %s123, %s126
      %p135 = scmp.eq.s32.totalorder %s15, 1
      %p136 = por %p134, %p135
      %p137 = scmp.ne.s32.totalorder %s126, %s127
      %p138 = scmp.eq.s32.totalorder %s15, 0
      %p139 = por %p137, %p138
      %p140 = scmp.ne.s32.totalorder %s126, %s127
      %p141 = scmp.eq.s32.totalorder %s16, 1
      %p142 = por %p140, %p141
      %p144 = scmp.ne.s32.totalorder %s127, %s143
      %p145 = scmp.eq.s32.totalorder %s16, 0
      %p146 = por %p144, %p145
      %p147 = scmp.le.s32.totalorder 1, %s10
      %p148 = scmp.lt.s32.totalorder %s10, 3
      %p149 = pnand %p147, %p148
      %p150 = pneg %p149
      // Predicated region
      $region9: #{poincare_ball_linear.1} parent=5 // pred_check
        _
      $region10: #{poincare_ball_linear.1} parent=5 // pred_check_branch
        %152 = sbr.rel (%p149) target = $region12
      $region11: #{poincare_ball_linear.1} parent=5 // pred_region
        %s153 = ssub.s32 %s10, 1
        // Predicated region
        $region13: #{poincare_ball_linear.1} parent=11 // pred_check
          %p154 = pneg %p85
        $region14: #{poincare_ball_linear.1} parent=11 // pred_check_branch
          %156 = sbr.rel (%p154) target = $region16
        $region15: #{poincare_ball_linear.1} parent=11 // pred_region
          %s157 = smul.u32 16, %s22
          %s159 = ssub.s32 2048, 2048
          %160 = vsyncadd [#allocation3], %s159
          %s161 = sadd.s32 %s21, %s157
          %s162 = smul.addr %s161, 128
          %s163 = scalar_lea.hbm %s1, %s162
          %s164 = sshll.u32 [#allocation2], 4
          %s165 = int_to_ptr.vmem [resolvable:$true] %s164
          %170 = dma.hbm_to_vmem [thread:$0]  %s163, 2048, %s165, [#allocation3], 128, 128, 8
        $region16: #{poincare_ball_linear.1} parent=11 // pred_fallthru
          _
        // Predicated region
        $region17: #{poincare_ball_linear.1} parent=11 // pred_check
          %p171 = pneg %p111
        $region18: #{poincare_ball_linear.1} parent=11 // pred_check_branch
          %173 = sbr.rel (%p171) target = $region20
        $region19: #{poincare_ball_linear.1} parent=11 // pred_region
          %p174 = scmp.lt.s32.totalorder %s21, 0
          %s175 = scalar_select %p174, %s21, 0
          %s176 = scalar_lea.vmem %s2, %s175
        $region20: #{poincare_ball_linear.1} parent=11 // pred_fallthru
          _
      $region12: #{poincare_ball_linear.1} parent=5 // pred_fallthru
        _
      %p177 = scmp.lt.s32.totalorder %s10, 2
      // Predicated region
      $region21: #{poincare_ball_linear.1} parent=5 // pred_check
        %p178 = pneg %p177
      $region22: #{poincare_ball_linear.1} parent=5 // pred_check_branch
        %180 = sbr.rel (%p178) target = $region24
      $region23: #{poincare_ball_linear.1} parent=5 // pred_region
        // Predicated region
        $region25: #{poincare_ball_linear.1} parent=23 // pred_check
          %p181 = pneg %p51
        $region26: #{poincare_ball_linear.1} parent=23 // pred_check_branch
          %183 = sbr.rel (%p181) target = $region28
        $region27: #{poincare_ball_linear.1} parent=23 // pred_region
          %p184 = scmp.lt.s32.totalorder %s17, 1
          %s185 = scalar_select %p184, %s17, 1
          %p186 = scmp.lt.s32.totalorder %s19, 0
          %s187 = scalar_select %p186, %s19, 0
          %s188 = sadd.s32 %s187, %s185
          %s189 = smul.addr %s188, 8
          %s190 = scalar_lea.vmem %s0, %s189
        $region28: #{poincare_ball_linear.1} parent=23 // pred_fallthru
          _
      $region24: #{poincare_ball_linear.1} parent=5 // pred_fallthru
        _
      %p191 = scmp.le.s32.totalorder 1, %s10
      %p192 = scmp.lt.s32.totalorder %s10, 3
      %p193 = pnand %p191, %p192
      %p194 = pneg %p193
      // Predicated region
      $region29: #{poincare_ball_linear.1} parent=5 // pred_check
        _
      $region30: #{poincare_ball_linear.1} parent=5 // pred_check_branch
        %196 = sbr.rel (%p193) target = $region32
      $region31: #{poincare_ball_linear.1} parent=5 // pred_region
        %s197 = ssub.s32 %s10, 1
        // Predicated region
        $region33: #{poincare_ball_linear.1} parent=31 // pred_check
          %p198 = pneg %p85
        $region34: #{poincare_ball_linear.1} parent=31 // pred_check_branch
          %200 = sbr.rel (%p198) target = $region36
        $region35: #{poincare_ball_linear.1} parent=31 // pred_region
          %201 = dma.done [#allocation3], 2048
        $region36: #{poincare_ball_linear.1} parent=31 // pred_fallthru
          _
        %p202 = scmp.lt.s32.totalorder %s20, 1
        %s203 = scalar_select %p202, %s20, 1
        %p204 = scmp.lt.s32.totalorder %s22, 0
        %s205 = scalar_select %p204, %s22, 0
        %s206 = sadd.s32 %s205, %s203
        %s207 = smul.addr %s206, 8
        %s208 = scalar_lea.vmem %s0, %s207
        %p209 = pneg %p57
        %p210 = pneg %p54
        %p211 = pneg %p85
        %p212 = pneg %p82
        %p213 = scmp.lt.s32.totalorder %s21, 0
        %s214 = scalar_select %p213, %s21, 0
        %s215 = scalar_lea.vmem %s2, %s214
        %p216 = pneg %p111
        %p217 = pneg %p108
        %p218 = pneg %p139
        %p219 = pneg %p136
        %p220 = scmp.lt.s32.totalorder %s20, 1
        %s221 = scalar_select %p220, %s20, 1
        %p222 = scmp.lt.s32.totalorder %s21, 0
        %s223 = scalar_select %p222, %s21, 0
        %s224 = sadd.s32 %s223, %s221
        %s225 = smul.addr %s224, 8
        %s226 = scalar_lea.vmem %s3, %s225
        %p227 = scmp.lt.s32.totalorder %s20, 1
        %s228 = scalar_select %p227, %s20, 1
        %p229 = scmp.lt.s32.totalorder %s22, 0
        %s230 = scalar_select %p229, %s22, 0
        %s231 = sadd.s32 %s230, %s228
        %s232 = smul.addr %s231, 8
        %s233 = scalar_lea.vmem %s0, %s232
        %s234 = smul.u32 16, %s22
        %p235 = scmp.lt.s32.totalorder %s21, 0
        %s236 = scalar_select %p235, %s21, 0
        %s237 = scalar_lea.vmem %s2, %s236
        %p238 = scmp.lt.s32.totalorder %s20, 1
        %s239 = scalar_select %p238, %s20, 1
        %p240 = scmp.lt.s32.totalorder %s21, 0
        %s241 = scalar_select %p240, %s21, 0
        %s242 = sadd.s32 %s241, %s239
        %s243 = smul.addr %s242, 8
        %s244 = scalar_lea.vmem %s3, %s243
        %v245 = vld [vmem:[%s233] sm:$0xff]
        %v246 = vld [vmem:[#allocation2] sm:$0xff]
        %v247 = vld [vmem:[#allocation2 + $0x8] sm:$0xff]
        %v248 = vld [vmem:[#allocation2 + $0x10] sm:$0xff]
        %v249 = vld [vmem:[#allocation2 + $0x18] sm:$0xff]
        %v250 = vld [vmem:[#allocation2 + $0x20] sm:$0xff]
        %v251 = vld [vmem:[#allocation2 + $0x28] sm:$0xff]
        %v252 = vld [vmem:[#allocation2 + $0x30] sm:$0xff]
        %v253 = vld [vmem:[#allocation2 + $0x38] sm:$0xff]
        %v254 = vld [vmem:[#allocation2 + $0x40] sm:$0xff]
        %v255 = vld [vmem:[#allocation2 + $0x48] sm:$0xff]
        %v256 = vld [vmem:[#allocation2 + $0x50] sm:$0xff]
        %v257 = vld [vmem:[#allocation2 + $0x58] sm:$0xff]
        %v258 = vld [vmem:[#allocation2 + $0x60] sm:$0xff]
        %v259 = vld [vmem:[#allocation2 + $0x68] sm:$0xff]
        %v260 = vld [vmem:[#allocation2 + $0x70] sm:$0xff]
        %v261 = vld [vmem:[#allocation2 + $0x78] sm:$0xff]
        %262 = vmatprep.subr.mxu0 0.0
        %263 = vmatpush1.msra.mxu0 %v246
        %264 = vmatprep.subr.mxu0 0.0
        %265 = vmatpush1.msra.mxu0 %v247
        %266 = vmatprep.subr.mxu0 0.0
        %267 = vmatpush1.msra.mxu0 %v248
        %268 = vmatprep.subr.mxu0 0.0
        %269 = vmatpush1.msra.mxu0 %v249
        %270 = vmatprep.subr.mxu0 0.0
        %271 = vmatpush1.msra.mxu0 %v250
        %272 = vmatprep.subr.mxu0 0.0
        %273 = vmatpush1.msra.mxu0 %v251
        %274 = vmatprep.subr.mxu0 0.0
        %275 = vmatpush1.msra.mxu0 %v252
        %276 = vmatprep.subr.mxu0 0.0
        %277 = vmatpush1.msra.mxu0 %v253
        %278 = vmatprep.subr.mxu0 0.0
        %279 = vmatpush1.msra.mxu0 %v254
        %280 = vmatprep.subr.mxu0 0.0
        %281 = vmatpush1.msra.mxu0 %v255
        %282 = vmatprep.subr.mxu0 0.0
        %283 = vmatpush1.msra.mxu0 %v256
        %284 = vmatprep.subr.mxu0 0.0
        %285 = vmatpush1.msra.mxu0 %v257
        %286 = vmatprep.subr.mxu0 0.0
        %287 = vmatpush1.msra.mxu0 %v258
        %288 = vmatprep.subr.mxu0 0.0
        %289 = vmatpush1.msra.mxu0 %v259
        %290 = vmatprep.subr.mxu0 0.0
        %291 = vmatpush1.msra.mxu0 %v260
        %292 = vmatprep.subr.mxu0 0.0
        %293 = vmatpush1.msra.mxu0 %v261
        %294 = vmatprep.subr.mxu0 0.0
        %295 = vmatpush1.msra.mxu0 0.0
        %296 = vmatprep.subr.mxu0 0.0
        %297 = vmatpush1.msra.mxu0 0.0
        %298 = vmatprep.subr.mxu0 0.0
        %299 = vmatpush1.msra.mxu0 0.0
        %300 = vmatprep.subr.mxu0 0.0
        %301 = vmatpush1.msra.mxu0 0.0
        %302 = vmatprep.subr.mxu0 0.0
        %303 = vmatpush1.msra.mxu0 0.0
        %304 = vmatprep.subr.mxu0 0.0
        %305 = vmatpush1.msra.mxu0 0.0
        %306 = vmatprep.subr.mxu0 0.0
        %307 = vmatpush1.msra.mxu0 0.0
        %308 = vmatprep.subr.mxu0 0.0
        %309 = vmatpush1.msra.mxu0 0.0
        %310 = vmatprep.subr.mxu0 0.0
        %311 = vmatpush1.msra.mxu0 0.0
        %312 = vmatprep.subr.mxu0 0.0
        %313 = vmatpush1.msra.mxu0 0.0
        %314 = vmatprep.subr.mxu0 0.0
        %315 = vmatpush1.msra.mxu0 0.0
        %316 = vmatprep.subr.mxu0 0.0
        %317 = vmatpush1.msra.mxu0 0.0
        %318 = vmatprep.subr.mxu0 0.0
        %319 = vmatpush1.msra.mxu0 0.0
        %320 = vmatprep.subr.mxu0 0.0
        %321 = vmatpush1.msra.mxu0 0.0
        %322 = vmatprep.subr.mxu0 0.0
        %323 = vmatpush1.msra.mxu0 0.0
        %324 = vmatprep.subr.mxu0 0.0
        %325 = vmatpush1.msra.mxu0 0.0
        %326 = vmatprep.mubr.f32.mxu0 0.0
        %327 = vmatmul.mubr.f32.gmra.mrb[0].mxu0 %v245
        %v328 = vpop.f32.mrb[0].mxu0
        %v329 = vadd.f32 0.0, %v328
        %v330 = vpop.f32.mrb[0].mxu0
        %331 = vdwg.mxu0
        %p332 = scmp.eq.s32.totalorder %s22, 0
        // Predicated region
        $region37: #{poincare_ball_linear.1} parent=31 // pred_check
          %p333 = pneg %p332
        $region38: #{poincare_ball_linear.1} parent=31 // pred_check_branch
          %335 = sbr.rel (%p333) target = $region40
        $region39: #{poincare_ball_linear.1} parent=31 // pred_region
          %336 = vst [vmem:[%s244] sm:$0xff] %v329
        $region40: #{poincare_ball_linear.1} parent=31 // pred_fallthru
          _
        %p337 = scmp.gt.s32.totalorder %s22, 0
        // Predicated region
        $region41: #{poincare_ball_linear.1} parent=31 // pred_check
          %p338 = pneg %p337
        $region42: #{poincare_ball_linear.1} parent=31 // pred_check_branch
          %340 = sbr.rel (%p338) target = $region44
        $region43: #{poincare_ball_linear.1} parent=31 // pred_region
          %v341 = vld [vmem:[%s244] sm:$0xff]
          %v342 = vadd.f32 %v341, %v329
          %343 = vst [vmem:[%s244] sm:$0xff] %v342
        $region44: #{poincare_ball_linear.1} parent=31 // pred_fallthru
          _
        // Predicated region
        $region45: #{poincare_ball_linear.1} parent=31 // pred_check
          %p344 = pneg %p332
        $region46: #{poincare_ball_linear.1} parent=31 // pred_check_branch
          %346 = sbr.rel (%p344) target = $region48
        $region47: #{poincare_ball_linear.1} parent=31 // pred_region
          %v347 = vld [vmem:[%s244] sm:$0xff]
          %v348 = vld [vmem:[%s237] sm:$0x1]
          %v350 = vlaneseq
          %v351 = vshrl.u32 %v350, 7
          %v352 = vsub.s32 0, %v351
          %v353 = vrot.slane %v348, %v352
          %v355 = vadd.f32 %v347, %v353
          %356 = vst [vmem:[%s244] sm:$0xff] %v355
        $region48: #{poincare_ball_linear.1} parent=31 // pred_fallthru
          _
        %p357 = scmp.lt.s32.totalorder %s20, 1
        %s358 = scalar_select %p357, %s20, 1
        %p359 = scmp.lt.s32.totalorder %s21, 0
        %s360 = scalar_select %p359, %s21, 0
        %s361 = sadd.s32 %s360, %s358
        %s362 = smul.addr %s361, 8
        %s363 = scalar_lea.vmem %s3, %s362
        // Predicated region
        $region49: #{poincare_ball_linear.1} parent=31 // pred_check
          %p364 = pneg %p136
        $region50: #{poincare_ball_linear.1} parent=31 // pred_check_branch
          %366 = sbr.rel (%p364) target = $region52
        $region51: #{poincare_ball_linear.1} parent=31 // pred_region
          _
        $region52: #{poincare_ball_linear.1} parent=31 // pred_fallthru
          _
      $region32: #{poincare_ball_linear.1} parent=5 // pred_fallthru
        _
      %p367 = scmp.le.s32.totalorder 2, %s10
      // Predicated region
      $region53: #{poincare_ball_linear.1} parent=5 // pred_check
        %p368 = pneg %p367
      $region54: #{poincare_ball_linear.1} parent=5 // pred_check_branch
        %370 = sbr.rel (%p368) target = $region56
      $region55: #{poincare_ball_linear.1} parent=5 // pred_region
        %s371 = ssub.s32 %s10, 2
        // Predicated region
        $region57: #{poincare_ball_linear.1} parent=55 // pred_check
          %p372 = pneg %p142
        $region58: #{poincare_ball_linear.1} parent=55 // pred_check_branch
          %374 = sbr.rel (%p372) target = $region60
        $region59: #{poincare_ball_linear.1} parent=55 // pred_region
          %p375 = scmp.lt.s32.totalorder %s23, 1
          %s376 = scalar_select %p375, %s23, 1
          %p377 = scmp.lt.s32.totalorder %s24, 0
          %s378 = scalar_select %p377, %s24, 0
          %s379 = sadd.s32 %s378, %s376
          %s380 = smul.addr %s379, 8
          %s381 = scalar_lea.vmem %s3, %s380
        $region60: #{poincare_ball_linear.1} parent=55 // pred_fallthru
          _
      $region56: #{poincare_ball_linear.1} parent=5 // pred_fallthru
        _
    $region6: #{poincare_ball_linear.1} parent=1 // loop_footer
      %s14 = sadd.s32 1, %s10
    $region7: #{poincare_ball_linear.1} parent=1 // loop_footer_branch
      %9 = sbr.rel target = $region3
    $region8: #{poincare_ball_linear.1} parent=1 // loop_exit
      _
    %382 = vsyncpa [#allocation3], 1
    %s383 = scalar_lea.sflag [#allocation3], 1
    %384 = vsyncpa %s383, 1

</llo_original>
